<compile_context>
chip_gen: v6e
topology: v6e:2x2x1
jax: 0.10.0
libtpu: 0.0.40
codegen_flags: <defaults>
</compile_context>

<pallas_src>
import jax
import jax.numpy as jnp
from jax import lax
from jax.experimental import pallas as pl
from jax.experimental.pallas import tpu as pltpu


def _round_up(x, m):
    return (x + m - 1) // m * m


def _round_down(x, m):
    return (x // m) * m


def _proj_kernel(x_ref, w_ref, b_ref, o_ref):
    # x_ref: (TM, K)  bf16 patch tile (pipelined over the grid)
    # w_ref: (K, Np)  bf16 projection weight (grid-invariant -> stays resident)
    # b_ref: (1, Np)  f32 bias (grid-invariant)
    acc = jnp.dot(x_ref[...], w_ref[...], preferred_element_type=jnp.float32)
    o_ref[...] = (acc + b_ref[...]).astype(o_ref.dtype)


def _choose_tile_m(M, tm_cap):
    """Pick the M tile: as big as VMEM allows, MXU-aligned, multi-step when it matters."""
    tm_cap = max(8, _round_down(tm_cap, 8))
    if M <= 1024:
        return min(_round_up(M, 8), tm_cap)
    tm = min(tm_cap, 2048)
    if tm >= 256:
        tm = _round_down(tm, 256)          # full 256-wide MXU passes (v6e/v7x)
        # Keep >= 4 grid steps so the "parallel" grid axis load-balances across
        # both TensorCores on v7x instead of collapsing to 1 serialized step.
        while tm > 256 and pl.cdiv(M, tm) < 4:
            tm -= 256
    return max(tm, 8)


def video_patch_embed(pixel_values, weight, bias, *, patch_size, tubelet_size,
                      compute_dtype=jnp.bfloat16):
    """
    pixel_values: (B, T, C, H, W)                  (PyTorch input layout)
    weight:       (hidden, C, tubelet, p, p)       (PyTorch Conv3d weight layout)
    bias:         (hidden,)
    returns:      (B, seq_len, hidden)
    """
    B, T, C, H, W = pixel_values.shape
    hidden = weight.shape[0]
    p = patch_size
    tub = tubelet_size
    Tp, Hp, Wp = T // tub, H // p, W // p
    num_patches = Tp * Hp * Wp
    K = C * tub * p * p
    M = B * num_patches
    out_dtype = pixel_values.dtype

    # ---- patchify glue (wrapper side) ----
    # Cast to bf16 BEFORE the transpose: the MXU runs at its bf16 rate and the
    # materialized (M, K) intermediate carries half the bytes (convert fuses
    # into the transpose copy). Bias stays f32.
    # TODO(synk): fold the patch gather into the kernel's BlockSpec/index_map so
    # pixel_values is read straight from HBM; the per-(c,kt,kh) accumulation of
    # (Wp x p) @ (p x hidden) matmuls that this requires keeps the MXU under
    # ~10% utilization (K=p per matmul) and an in-VMEM relayout of (tub,C,p,W)
    # tiles risks Mosaic lowering failures, so the dense-GEMM layout is kept.
    x = pixel_values.astype(compute_dtype)
    x = jnp.transpose(x, (0, 2, 1, 3, 4))                    # (B, C, T, H, W)
    x = x.reshape(B, C, Tp, tub, Hp, p, Wp, p)
    x = jnp.transpose(x, (0, 2, 4, 6, 1, 3, 5, 7))           # (B,Tp,Hp,Wp,C,tub,p,p)
    patches = x.reshape(M, K)                                # K-order == Conv3d weight order

    w_mat = weight.reshape(hidden, K).T.astype(compute_dtype)   # (K, hidden)
    b_mat = bias.reshape(1, hidden).astype(jnp.float32)         # float32 end-to-end

    # Pad only the feature axis when not lane-aligned (cheap: weight/bias only).
    # K is never padded — full-K blocks are legal and padding `patches` would
    # cost another full HBM copy of the activations.
    Np = hidden if hidden % 128 == 0 else _round_up(hidden, 128)
    if Np != hidden:
        w_mat = jnp.pad(w_mat, ((0, 0), (0, Np - hidden)))
        b_mat = jnp.pad(b_mat, ((0, 0), (0, Np - hidden)))

    in_item = jnp.dtype(compute_dtype).itemsize
    out_item = jnp.dtype(out_dtype).itemsize

    # ---- VMEM provisioning (per chip generation) ----
    try:
        vmem_cap = int(getattr(pltpu.get_tpu_info(), "vmem_capacity_bytes",
                               64 * 1024 * 1024))
    except Exception:
        vmem_cap = 64 * 1024 * 1024            # v7x per-TC floor
    budget = (vmem_cap * 3) // 4               # ~96 MiB on v5e/v6e, ~48 MiB on v7x

    # Pallas allocates 2 buffers per spec'd operand; the weight/bias are
    # grid-invariant (no re-DMA) but still get 2 buffers, so count both.
    fixed_bytes = 2 * K * Np * in_item + 2 * Np * 4
    per_row_bytes = 2 * K * in_item + 2 * Np * out_item
    tm_cap = max(8, (budget - fixed_bytes) // per_row_bytes)
    TM = _choose_tile_m(M, tm_cap)
    grid = (pl.cdiv(M, TM),)                   # ragged last block: OOB rows are
                                               # garbage on read, dropped on write

    vmem_usage = fixed_bytes + TM * per_row_bytes
    vmem_limit = int(min(vmem_cap, max(32 * 1024 * 1024, vmem_usage + (8 << 20))))

    cost = pl.CostEstimate(
        flops=2 * M * K * Np,
        transcendentals=0,
        bytes_accessed=M * K * in_item + K * Np * in_item + M * Np * out_item,
    )

    out = pl.pallas_call(
        _proj_kernel,
        out_shape=jax.ShapeDtypeStruct((M, Np), out_dtype),
        grid_spec=pltpu.PrefetchScalarGridSpec(
            num_scalar_prefetch=0,
            grid=grid,
            in_specs=[
                pl.BlockSpec((TM, K), lambda i: (i, 0)),   # patch tile (pipelined)
                pl.BlockSpec((K, Np), lambda i: (0, 0)),   # weight (VMEM-resident)
                pl.BlockSpec((1, Np), lambda i: (0, 0)),   # f32 bias (VMEM-resident)
            ],
            out_specs=pl.BlockSpec((TM, Np), lambda i: (i, 0)),
        ),
        compiler_params=pltpu.CompilerParams(
            dimension_semantics=("parallel",),
            vmem_limit_bytes=vmem_limit,
        ),
        cost_estimate=cost,
    )(patches, w_mat, b_mat)

    if Np != hidden:
        out = out[:, :hidden]
    return out.reshape(B, num_patches, hidden)


if __name__ == "__main__":
    # Small config consistent with the module:
    #   image_size=16, patch_size=8, num_channels=3, hidden_size=32,
    #   num_frames=4, tubelet_size=2  ->  num_patches = 2*2*2 = 8
    B, T, C, H, W = 2, 4, 3, 16, 16
    patch_size, tubelet_size, hidden = 8, 2, 32

    key = jax.random.PRNGKey(0)
    k_x, k_w, k_b = jax.random.split(key, 3)
    pixel_values = jax.random.normal(k_x, (B, T, C, H, W), dtype=jnp.float32)
    weight = (jax.random.normal(k_w, (hidden, C, tubelet_size, patch_size, patch_size),
                                dtype=jnp.float32) * 0.02)
    bias = jax.random.normal(k_b, (hidden,), dtype=jnp.float32) * 0.01

    out = video_patch_embed(pixel_values, weight, bias,
                            patch_size=patch_size, tubelet_size=tubelet_size)
    out = jax.block_until_ready(out)

    # Reference: plain-JAX Conv3d (kernel==stride). The kernel intentionally
    # feeds the MXU bf16 inputs (with f32 accumulation and f32 bias), so the
    # reference uses the same bf16-rounded inputs with f32 accumulation.
    x_bf = pixel_values.astype(jnp.bfloat16).astype(jnp.float32)
    w_bf = weight.astype(jnp.bfloat16).astype(jnp.float32)
    x_ncthw = jnp.transpose(x_bf, (0, 2, 1, 3, 4))            # (B, C, T, H, W)
    ref = lax.conv_general_dilated(
        x_ncthw, w_bf,
        window_strides=(tubelet_size, patch_size, patch_size),
        padding="VALID",
        dimension_numbers=("NCDHW", "OIDHW", "NCDHW"),
        preferred_element_type=jnp.float32,
    ) + bias.reshape(1, hidden, 1, 1, 1)
    ref = ref.reshape(B, hidden, -1).transpose(0, 2, 1)       # (B, seq, hidden)

    seq = (T // tubelet_size) * (H // patch_size) * (W // patch_size)
    assert out.shape == (B, seq, hidden)
    err = float(jnp.max(jnp.abs(out - ref)))
    assert jnp.allclose(out, ref, atol=1e-2, rtol=1e-2), err
    print("KERNEL_OK")
</pallas_src>

<mosaic_0001>
module attributes {stable_mosaic.version = 11 : i64} {
  func.func @_proj_kernel(%arg0: i32, %arg1: memref<16x384xbf16, #tpu.memory_space<vmem>>, %arg2: memref<384x128xbf16, #tpu.memory_space<vmem>>, %arg3: memref<1x128xf32, #tpu.memory_space<vmem>>, %arg4: memref<16x128xf32, #tpu.memory_space<vmem>>) attributes {dimension_semantics = [#tpu.dimension_semantics<parallel>], iteration_bounds = array<i64: 1>, scalar_prefetch = 0 : i64, scratch_operands = 0 : i64, tpu.core_type = #tpu.core_type<tc>, window_params = [{transform_indices = @transform_0, window_bounds = array<i64: 16, 384>}, {pipeline_mode = #tpu.pipeline_mode<synchronous>, transform_indices = @transform_1, window_bounds = array<i64: 384, 128>}, {pipeline_mode = #tpu.pipeline_mode<synchronous>, transform_indices = @transform_2, window_bounds = array<i64: 1, 128>}, {transform_indices = @transform_3, window_bounds = array<i64: 16, 128>}]} {
    %c0 = arith.constant 0 : index
    %c0_0 = arith.constant 0 : index
    %0 = vector.load %arg1[%c0, %c0_0] : memref<16x384xbf16, #tpu.memory_space<vmem>>, vector<16x384xbf16>
    %c0_1 = arith.constant 0 : index
    %c0_2 = arith.constant 0 : index
    %1 = vector.load %arg2[%c0_1, %c0_2] : memref<384x128xbf16, #tpu.memory_space<vmem>>, vector<384x128xbf16>
    %cst = arith.constant dense<0.000000e+00> : vector<16x128xf32>
    %2 = tpu.matmul %0, %1, %cst {dimension_numbers = #tpu.dot_dimension_numbers<[1], [0], [0], [1], [0, 0, 1, 1], [], []>} : vector<16x384xbf16>, vector<384x128xbf16>, vector<16x128xf32> -> vector<16x128xf32>
    %c0_3 = arith.constant 0 : index
    %c0_4 = arith.constant 0 : index
    %3 = vector.load %arg3[%c0_3, %c0_4] : memref<1x128xf32, #tpu.memory_space<vmem>>, vector<1x128xf32>
    %4 = vector.broadcast %3 : vector<1x128xf32> to vector<16x128xf32>
    %5 = arith.addf %2, %4 : vector<16x128xf32>
    %c0_5 = arith.constant 0 : index
    %c0_6 = arith.constant 0 : index
    %6 = vector.load %arg4[%c0_5, %c0_6] : memref<16x128xf32, #tpu.memory_space<vmem>>, vector<16x128xf32>
    tpu.vector_store %arg4[%c0_5, %c0_6], %5 {strides = array<i32>} : memref<16x128xf32, #tpu.memory_space<vmem>>, vector<16x128xf32>,
    return
  }
  func.func @transform_0(%arg0: i32) -> (i32, i32) {
    %c0_i32 = arith.constant 0 : i32
    %c0_i32_0 = arith.constant 0 : i32
    return %arg0, %c0_i32 : i32, i32
  }
  func.func @transform_1(%arg0: i32) -> (i32, i32) {
    %c0_i32 = arith.constant 0 : i32
    %c0_i32_0 = arith.constant 0 : i32
    %c0_i32_1 = arith.constant 0 : i32
    return %c0_i32, %c0_i32_0 : i32, i32
  }
  func.func @transform_2(%arg0: i32) -> (i32, i32) {
    %c0_i32 = arith.constant 0 : i32
    %c0_i32_0 = arith.constant 0 : i32
    %c0_i32_1 = arith.constant 0 : i32
    return %c0_i32, %c0_i32_0 : i32, i32
  }
  func.func @transform_3(%arg0: i32) -> (i32, i32) {
    %c0_i32 = arith.constant 0 : i32
    %c0_i32_0 = arith.constant 0 : i32
    return %arg0, %c0_i32 : i32, i32
  }
}

</mosaic_0001>

<llo_original>
// kernel: tpu_custom_call.1
$region0: #{tpu_custom_call.1}
  #allocation0 [shape = 'u32[]', space=smem, size = 0x4, offset = 0x4, fixed_abs, tag = 'smem constant byte address 0x4 - core index']
  #allocation1 [shape = 'u32[144,128]{1,0:T(1,128)}', space=vmem, size = 0x12000, scoped, tag = 'internal scratch']
  %s0 = inlined_call_operand.hbm [shape: bf16[16,384], index: 0, kind: input, shape index: {}]
  %s1 = inlined_call_operand.hbm [shape: bf16[384,128], index: 1, kind: input, shape index: {}]
  %s2 = inlined_call_operand.vmem [shape: f32[1,128], index: 2, kind: input, shape index: {}]
  %s3 = inlined_call_operand.hbm [shape: f32[16,128], index: 3, kind: output, shape index: {}]
  %s4 = sld [smem:[#allocation0]]
  $region30: #{tpu_custom_call.1} parent=0
    _
  %s6 = ssub.s32 1, %s4
  %s7 = scalar_select 0, %s6, %s4
  $region1: #{tpu_custom_call.1} parent=0
    #allocation2 [shape = 'u8[12288]{0}', space=vmem, size = 0x3000, scoped, tag = 'input window, operand 0, single buffered']
    #allocation3 [shape = 's32[1]{0}', space=sflag, size = 0x4, scoped, tag = 'scoped memory for tpu_custom_call.1']
    #allocation4 [shape = 's32[1]{0}', space=sflag, size = 0x4, scoped, tag = 'scoped memory for tpu_custom_call.1']
    #allocation5 [shape = 'u8[98304]{0}', space=vmem, size = 0x18000, scoped, tag = 'input window, operand 1, single buffered']
    #allocation6 [shape = 's32[1]{0}', space=sflag, size = 0x4, scoped, tag = 'scoped memory for tpu_custom_call.1']
    #allocation7 [shape = 'u8[8192]{0}', space=vmem, size = 0x2000, scoped, tag = 'output window, operand 0, single buffered']
    %8 = vsyncpa [#allocation3], 0
    %9 = vsyncpa [#allocation6], 0
    %10 = vsyncpa [#allocation4], 0
    // Predicated region
    $region2: #{tpu_custom_call.1} parent=1 // pred_check
      _
    $region3: #{tpu_custom_call.1} parent=1 // pred_check_branch
      %12 = sbr.rel (0) target = $region5
    $region4: #{tpu_custom_call.1} parent=1 // pred_region
      %s14 = ssub.s32 384, 384
      %15 = vsyncadd [#allocation3], %s14
      %s16 = sshll.u32 [#allocation2], 4
      %s17 = int_to_ptr.vmem [resolvable:$true] %s16
      %22 = dma.hbm_to_vmem [thread:$0]  %s0, 384, %s17, [#allocation3], 192, 192, 12
    $region5: #{tpu_custom_call.1} parent=1 // pred_fallthru
      _
    // Predicated region
    $region6: #{tpu_custom_call.1} parent=1 // pred_check
      _
    $region7: #{tpu_custom_call.1} parent=1 // pred_check_branch
      %24 = sbr.rel (0) target = $region9
    $region8: #{tpu_custom_call.1} parent=1 // pred_region
      %s26 = ssub.s32 3072, 3072
      %27 = vsyncadd [#allocation6], %s26
      %s28 = sshll.u32 [#allocation5], 4
      %s29 = int_to_ptr.vmem [resolvable:$true] %s28
      %34 = dma.hbm_to_vmem [thread:$0]  %s1, 3072, %s29, [#allocation6], 64, 64, 4
    $region9: #{tpu_custom_call.1} parent=1 // pred_fallthru
      _
    // Predicated region
    $region10: #{tpu_custom_call.1} parent=1 // pred_check
      _
    $region11: #{tpu_custom_call.1} parent=1 // pred_check_branch
      %36 = sbr.rel (0) target = $region13
    $region12: #{tpu_custom_call.1} parent=1 // pred_region
      _
    $region13: #{tpu_custom_call.1} parent=1 // pred_fallthru
      _
    // Predicated region
    $region14: #{tpu_custom_call.1} parent=1 // pred_check
      _
    $region15: #{tpu_custom_call.1} parent=1 // pred_check_branch
      %38 = sbr.rel (0) target = $region17
    $region16: #{tpu_custom_call.1} parent=1 // pred_region
      %39 = dma.done [#allocation3], 384
    $region17: #{tpu_custom_call.1} parent=1 // pred_fallthru
      _
    // Predicated region
    $region18: #{tpu_custom_call.1} parent=1 // pred_check
      _
    $region19: #{tpu_custom_call.1} parent=1 // pred_check_branch
      %41 = sbr.rel (0) target = $region21
    $region20: #{tpu_custom_call.1} parent=1 // pred_region
      %42 = dma.done [#allocation6], 3072
    $region21: #{tpu_custom_call.1} parent=1 // pred_fallthru
      _
    %v44 = vld [vmem:[#allocation2] sm:$0xff]
    %v45 = vld [vmem:[#allocation2 + $0x8] sm:$0xf]
    %v46 = vld [vmem:[#allocation2 + $0xc] sm:$0xff]
    %v47 = vld [vmem:[#allocation2 + $0x14] sm:$0xf]
    %v48 = vld [vmem:[#allocation5] sm:$0xf]
    %v49 = vld [vmem:[#allocation5 + $0x4] sm:$0xf]
    %v50 = vld [vmem:[#allocation5 + $0x8] sm:$0xf]
    %v51 = vld [vmem:[#allocation5 + $0xc] sm:$0xf]
    %v52 = vld [vmem:[#allocation5 + $0x10] sm:$0xf]
    %v53 = vld [vmem:[#allocation5 + $0x14] sm:$0xf]
    %v54 = vld [vmem:[#allocation5 + $0x18] sm:$0xf]
    %v55 = vld [vmem:[#allocation5 + $0x1c] sm:$0xf]
    %v56 = vld [vmem:[#allocation5 + $0x20] sm:$0xf]
    %v57 = vld [vmem:[#allocation5 + $0x24] sm:$0xf]
    %v58 = vld [vmem:[#allocation5 + $0x28] sm:$0xf]
    %v59 = vld [vmem:[#allocation5 + $0x2c] sm:$0xf]
    %v60 = vld [vmem:[#allocation5 + $0x30] sm:$0xf]
    %v61 = vld [vmem:[#allocation5 + $0x34] sm:$0xf]
    %v62 = vld [vmem:[#allocation5 + $0x38] sm:$0xf]
    %v63 = vld [vmem:[#allocation5 + $0x3c] sm:$0xf]
    %v64 = vld [vmem:[#allocation5 + $0x40] sm:$0xf]
    %v65 = vld [vmem:[#allocation5 + $0x44] sm:$0xf]
    %v66 = vld [vmem:[#allocation5 + $0x48] sm:$0xf]
    %v67 = vld [vmem:[#allocation5 + $0x4c] sm:$0xf]
    %v68 = vld [vmem:[#allocation5 + $0x50] sm:$0xf]
    %v69 = vld [vmem:[#allocation5 + $0x54] sm:$0xf]
    %v70 = vld [vmem:[#allocation5 + $0x58] sm:$0xf]
    %v71 = vld [vmem:[#allocation5 + $0x5c] sm:$0xf]
    %v72 = vld [vmem:[#allocation5 + $0x60] sm:$0xf]
    %v73 = vld [vmem:[#allocation5 + $0x64] sm:$0xf]
    %v74 = vld [vmem:[#allocation5 + $0x68] sm:$0xf]
    %v75 = vld [vmem:[#allocation5 + $0x6c] sm:$0xf]
    %v76 = vld [vmem:[#allocation5 + $0x70] sm:$0xf]
    %v77 = vld [vmem:[#allocation5 + $0x74] sm:$0xf]
    %v78 = vld [vmem:[#allocation5 + $0x78] sm:$0xf]
    %v79 = vld [vmem:[#allocation5 + $0x7c] sm:$0xf]
    %v80 = vld [vmem:[#allocation5 + $0x80] sm:$0xf]
    %v81 = vld [vmem:[#allocation5 + $0x84] sm:$0xf]
    %v82 = vld [vmem:[#allocation5 + $0x88] sm:$0xf]
    %v83 = vld [vmem:[#allocation5 + $0x8c] sm:$0xf]
    %v84 = vld [vmem:[#allocation5 + $0x90] sm:$0xf]
    %v85 = vld [vmem:[#allocation5 + $0x94] sm:$0xf]
    %v86 = vld [vmem:[#allocation5 + $0x98] sm:$0xf]
    %v87 = vld [vmem:[#allocation5 + $0x9c] sm:$0xf]
    %v88 = vld [vmem:[#allocation5 + $0xa0] sm:$0xf]
    %v89 = vld [vmem:[#allocation5 + $0xa4] sm:$0xf]
    %v90 = vld [vmem:[#allocation5 + $0xa8] sm:$0xf]
    %v91 = vld [vmem:[#allocation5 + $0xac] sm:$0xf]
    %v92 = vld [vmem:[#allocation5 + $0xb0] sm:$0xf]
    %v93 = vld [vmem:[#allocation5 + $0xb4] sm:$0xf]
    %v94 = vld [vmem:[#allocation5 + $0xb8] sm:$0xf]
    %v95 = vld [vmem:[#allocation5 + $0xbc] sm:$0xf]
    %v96 = vld [vmem:[%s2] sm:$0x1]
    %v98 = vlaneseq
    %v99 = vshrl.u32 %v98, 7
    %v100 = vsub.s32 0, %v99
    %v101 = vrot.slane %v96, %v100
    %v107 = vunpack.c.l.b16 %v44
    %v108 = vunpack.c.h.b16 %v44
    %v109 = vunpack.c.l.b16 %v45
    %v110 = vunpack.c.l.b16 %v46
    %v111 = vunpack.c.h.b16 %v46
    %v112 = vunpack.c.l.b16 %v47
    %v113 = vpack.c.b16 %v110, %v107
    %v114 = vpack.c.b16 %v111, %v108
    %v115 = vpack.c.b16 %v112, %v109
    %v167 = vunpack.c.l.b16 %v48
    %v168 = vunpack.c.l.b16 %v49
    %v169 = vunpack.c.l.b16 %v50
    %v170 = vunpack.c.l.b16 %v51
    %v171 = vunpack.c.l.b16 %v52
    %v172 = vunpack.c.l.b16 %v53
    %v173 = vunpack.c.l.b16 %v54
    %v174 = vunpack.c.l.b16 %v55
    %v175 = vunpack.c.l.b16 %v56
    %v176 = vunpack.c.l.b16 %v57
    %v177 = vunpack.c.l.b16 %v58
    %v178 = vunpack.c.l.b16 %v59
    %v179 = vunpack.c.l.b16 %v60
    %v180 = vunpack.c.l.b16 %v61
    %v181 = vunpack.c.l.b16 %v62
    %v182 = vunpack.c.l.b16 %v63
    %v183 = vunpack.c.l.b16 %v64
    %v184 = vunpack.c.l.b16 %v65
    %v185 = vunpack.c.l.b16 %v66
    %v186 = vunpack.c.l.b16 %v67
    %v187 = vunpack.c.l.b16 %v68
    %v188 = vunpack.c.l.b16 %v69
    %v189 = vunpack.c.l.b16 %v70
    %v190 = vunpack.c.l.b16 %v71
    %v191 = vunpack.c.l.b16 %v72
    %v192 = vunpack.c.l.b16 %v73
    %v193 = vunpack.c.l.b16 %v74
    %v194 = vunpack.c.l.b16 %v75
    %v195 = vunpack.c.l.b16 %v76
    %v196 = vunpack.c.l.b16 %v77
    %v197 = vunpack.c.l.b16 %v78
    %v198 = vunpack.c.l.b16 %v79
    %v199 = vunpack.c.l.b16 %v80
    %v200 = vunpack.c.l.b16 %v81
    %v201 = vunpack.c.l.b16 %v82
    %v202 = vunpack.c.l.b16 %v83
    %v203 = vunpack.c.l.b16 %v84
    %v204 = vunpack.c.l.b16 %v85
    %v205 = vunpack.c.l.b16 %v86
    %v206 = vunpack.c.l.b16 %v87
    %v207 = vunpack.c.l.b16 %v88
    %v208 = vunpack.c.l.b16 %v89
    %v209 = vunpack.c.l.b16 %v90
    %v210 = vunpack.c.l.b16 %v91
    %v211 = vunpack.c.l.b16 %v92
    %v212 = vunpack.c.l.b16 %v93
    %v213 = vunpack.c.l.b16 %v94
    %v214 = vunpack.c.l.b16 %v95
    %v215 = vpack.c.b16 %v168, %v167
    %v216 = vpack.c.b16 %v170, %v169
    %v217 = vpack.c.b16 %v172, %v171
    %v218 = vpack.c.b16 %v174, %v173
    %v219 = vpack.c.b16 %v176, %v175
    %v220 = vpack.c.b16 %v178, %v177
    %v221 = vpack.c.b16 %v180, %v179
    %v222 = vpack.c.b16 %v182, %v181
    %v223 = vpack.c.b16 %v184, %v183
    %v224 = vpack.c.b16 %v186, %v185
    %v225 = vpack.c.b16 %v188, %v187
    %v226 = vpack.c.b16 %v190, %v189
    %v227 = vpack.c.b16 %v192, %v191
    %v228 = vpack.c.b16 %v194, %v193
    %v229 = vpack.c.b16 %v196, %v195
    %v230 = vpack.c.b16 %v198, %v197
    %v231 = vpack.c.b16 %v200, %v199
    %v232 = vpack.c.b16 %v202, %v201
    %v233 = vpack.c.b16 %v204, %v203
    %v234 = vpack.c.b16 %v206, %v205
    %v235 = vpack.c.b16 %v208, %v207
    %v236 = vpack.c.b16 %v210, %v209
    %v237 = vpack.c.b16 %v212, %v211
    %v238 = vpack.c.b16 %v214, %v213
    %263 = vmatprep.subr.bf16.mxu0 0
    %264 = vmatpush1.bf16.msra.mxu0 %v222
    %265 = vmatprep.subr.bf16.mxu0 0
    %266 = vmatpush1.bf16.msra.mxu0 %v221
    %267 = vmatprep.subr.bf16.mxu0 0
    %268 = vmatpush1.bf16.msra.mxu0 %v220
    %269 = vmatprep.subr.bf16.mxu0 0
    %270 = vmatpush1.bf16.msra.mxu0 %v219
    %271 = vmatprep.subr.bf16.mxu0 0
    %272 = vmatpush1.bf16.msra.mxu0 %v218
    %273 = vmatprep.subr.bf16.mxu0 0
    %274 = vmatpush1.bf16.msra.mxu0 %v217
    %275 = vmatprep.subr.bf16.mxu0 0
    %276 = vmatpush1.bf16.msra.mxu0 %v216
    %277 = vmatprep.subr.bf16.mxu0 0
    %278 = vmatpush1.bf16.msra.mxu0 %v215
    %279 = vmatprep.subr.bf16.mxu0 0
    %280 = vmatpush2.bf16.msra.mxu0 %v230
    %281 = vmatprep.subr.bf16.mxu0 0
    %282 = vmatpush2.bf16.msra.mxu0 %v229
    %283 = vmatprep.subr.bf16.mxu0 0
    %284 = vmatpush2.bf16.msra.mxu0 %v228
    %285 = vmatprep.subr.bf16.mxu0 0
    %286 = vmatpush2.bf16.msra.mxu0 %v227
    %287 = vmatprep.subr.bf16.mxu0 0
    %288 = vmatpush2.bf16.msra.mxu0 %v226
    %289 = vmatprep.subr.bf16.mxu0 0
    %290 = vmatpush2.bf16.msra.mxu0 %v225
    %291 = vmatprep.subr.bf16.mxu0 0
    %292 = vmatpush2.bf16.msra.mxu0 %v224
    %293 = vmatprep.subr.bf16.mxu0 0
    %294 = vmatpush2.bf16.msra.mxu0 %v223
    %295 = vmatprep.mubr.bf16.mxu0 %v114
    %296 = vmatmul.mubr.bf16.gmra.mxu0 %v113
    %v297 = vpop.f32.mrf.mxu0
    %v298 = vadd.f32 %v101, %v297
    %v299 = vpop.f32.mrf.mxu0
    %v300 = vpop.f32.mrf.mxu0
    %v301 = vadd.f32 %v101, %v300
    %v302 = vpop.f32.mrf.mxu0
    %303 = vdwg.mxu0
    %304 = vmatprep.subr.bf16.mxu0 0
    %305 = vmatpush1.bf16.msra.mxu0 %v238
    %306 = vmatprep.subr.bf16.mxu0 0
    %307 = vmatpush1.bf16.msra.mxu0 %v237
    %308 = vmatprep.subr.bf16.mxu0 0
    %309 = vmatpush1.bf16.msra.mxu0 %v236
    %310 = vmatprep.subr.bf16.mxu0 0
    %311 = vmatpush1.bf16.msra.mxu0 %v235
    %312 = vmatprep.subr.bf16.mxu0 0
    %313 = vmatpush1.bf16.msra.mxu0 %v234
    %314 = vmatprep.subr.bf16.mxu0 0
    %315 = vmatpush1.bf16.msra.mxu0 %v233
    %316 = vmatprep.subr.bf16.mxu0 0
    %317 = vmatpush1.bf16.msra.mxu0 %v232
    %318 = vmatprep.subr.bf16.mxu0 0
    %319 = vmatpush1.bf16.msra.mxu0 %v231
    %320 = vmatprep.subr.bf16.mxu0 0
    %321 = vmatpush2.bf16.msra.mxu0 0
    %322 = vmatprep.subr.bf16.mxu0 0
    %323 = vmatpush2.bf16.msra.mxu0 0
    %324 = vmatprep.subr.bf16.mxu0 0
    %325 = vmatpush2.bf16.msra.mxu0 0
    %326 = vmatprep.subr.bf16.mxu0 0
    %327 = vmatpush2.bf16.msra.mxu0 0
    %328 = vmatprep.subr.bf16.mxu0 0
    %329 = vmatpush2.bf16.msra.mxu0 0
    %330 = vmatprep.subr.bf16.mxu0 0
    %331 = vmatpush2.bf16.msra.mxu0 0
    %332 = vmatprep.subr.bf16.mxu0 0
    %333 = vmatpush2.bf16.msra.mxu0 0
    %334 = vmatprep.subr.bf16.mxu0 0
    %335 = vmatpush2.bf16.msra.mxu0 0
    %336 = vmatprep.mubr.bf16.mxu0 0
    %337 = vmatmul.mubr.bf16.gmra.mxu0 %v115
    %v338 = vpop.f32.mrf.mxu0
    %v339 = vadd.f32 %v298, %v338
    %v340 = vpop.f32.mrf.mxu0
    %v341 = vpop.f32.mrf.mxu0
    %v342 = vadd.f32 %v301, %v341
    %v343 = vpop.f32.mrf.mxu0
    %344 = vdwg.mxu0
    %345 = vst [vmem:[#allocation7] sm:$0xff] %v339
    %346 = vst [vmem:[#allocation7 + $0x8] sm:$0xff] %v342
    // Predicated region
    $region22: #{tpu_custom_call.1} parent=1 // pred_check
      _
    $region23: #{tpu_custom_call.1} parent=1 // pred_check_branch
      %348 = sbr.rel (0) target = $region25
    $region24: #{tpu_custom_call.1} parent=1 // pred_region
      %s350 = ssub.s32 256, 256
      %351 = vsyncadd [#allocation4], %s350
      %s352 = sshll.u32 [#allocation7], 4
      %s353 = int_to_ptr.vmem [resolvable:$true] %s352
      %358 = dma.vmem_to_hbm [thread:$0]  %s353, 256, %s3, [#allocation4], 128, 128, 8
    $region25: #{tpu_custom_call.1} parent=1 // pred_fallthru
      _
    // Predicated region
    $region26: #{tpu_custom_call.1} parent=1 // pred_check
      _
    $region27: #{tpu_custom_call.1} parent=1 // pred_check_branch
      %360 = sbr.rel (0) target = $region29
    $region28: #{tpu_custom_call.1} parent=1 // pred_region
      %361 = dma.done [#allocation4], 256
    $region29: #{tpu_custom_call.1} parent=1 // pred_fallthru
      _
    %362 = vsyncpa [#allocation3], 1
    %363 = vsyncpa [#allocation6], 1
    %364 = vsyncpa [#allocation4], 1

</llo_original>
